<compile_context>
chip_gen: v5e
topology: v5e:2x2
jax: 0.10.0
libtpu: 0.0.40
codegen_flags: <defaults>
</compile_context>

<pallas_src>
import jax
import jax.numpy as jnp
from jax.experimental import pallas as pl
from jax.experimental.pallas import tpu as pltpu

EPS = 1e-5


def _cbn_kernel(xr_ref, xi_ref, p_ref, yr_ref, yi_ref):
    # xr_ref / xi_ref / yr_ref / yi_ref: (N, C_BLK, HW)
    # p_ref: (C_BLK, 8) f32  -- columns [Wrr, Wri, Wii, Br, Bi, 0, 0, 0]
    xr = xr_ref[...].astype(jnp.float32)
    xi = xi_ref[...].astype(jnp.float32)
    n, cblk, hw = xr.shape
    inv_l = 1.0 / float(n * hw)

    def chan_sum(v):
        # reduce lanes first (XLU), then the leading batch dim (VPU adds)
        return jnp.sum(jnp.sum(v, axis=-1, keepdims=True), axis=0, keepdims=True)

    # --- Single pass over the block: raw per-channel moments.  (1, C_BLK, 1) ---
    Sr = chan_sum(xr)
    Si = chan_sum(xi)
    Srr = chan_sum(xr * xr)
    Sri = chan_sum(xr * xi)
    Sii = chan_sum(xi * xi)

    # --- O(C) scalar math: means, biased covariance, inverse matrix sqrt. ---
    Mr = Sr * inv_l
    Mi = Si * inv_l
    Vrr = jnp.maximum(Srr * inv_l - Mr * Mr, 0.0) + EPS
    Vri = Sri * inv_l - Mr * Mi
    Vii = jnp.maximum(Sii * inv_l - Mi * Mi, 0.0) + EPS

    tau = Vrr + Vii
    delta = Vrr * Vii - Vri * Vri
    s = jnp.sqrt(delta)
    t = jnp.sqrt(tau + 2.0 * s)
    rst = pl.reciprocal(s * t, approx=False)
    Urr = (s + Vii) * rst
    Uii = (s + Vrr) * rst
    Uri = -Vri * rst

    # Per-channel affine (still O(C) math -- negligible).
    p = p_ref[...].astype(jnp.float32)            # (C_BLK, 8)

    def col(k):
        return jnp.reshape(p[:, k:k + 1], (1, cblk, 1))

    Wrr, Wri, Wii, Br, Bi = col(0), col(1), col(2), col(3), col(4)
    Zrr = Wrr * Urr + Wri * Uri
    Zri = Wrr * Uri + Wri * Uii
    Zir = Wri * Urr + Wii * Uri
    Zii = Wri * Uri + Wii * Uii

    # Fold the mean subtraction into the bias:  y = Z @ (x - M) + B = Z @ x + b'
    br = Br - (Zrr * Mr + Zri * Mi)
    bi = Bi - (Zir * Mr + Zii * Mi)

    # --- Second (final) pass: pure mul/add apply, lane-dense stores. ---
    yr_ref[...] = (Zrr * xr + Zri * xi + br).astype(yr_ref.dtype)
    yi_ref[...] = (Zir * xr + Zii * xi + bi).astype(yi_ref.dtype)


def complex_batch_norm(xr, xi, Wrr, Wri, Wii, Br, Bi):
    """Training-mode ComplexBatchNorm forward. xr, xi: (N, C, H, W)."""
    N, C, H, W = xr.shape
    HW = H * W
    dtype = xr.dtype
    itemsize = jnp.dtype(dtype).itemsize

    # Free views -- no HBM transpose passes.
    xr3 = xr.reshape(N, C, HW)
    xi3 = xi.reshape(N, C, HW)

    # Pack the 5 per-channel parameters into one (C, 8) f32 array.
    zeros = jnp.zeros((C,), jnp.float32)
    params = jnp.stack(
        [Wrr.astype(jnp.float32), Wri.astype(jnp.float32), Wii.astype(jnp.float32),
         Br.astype(jnp.float32), Bi.astype(jnp.float32), zeros, zeros, zeros],
        axis=-1)                                   # (C, 8)

    # Pad channels to a multiple of 8 (sublane alignment) when needed.
    C_pad = max(8, ((C + 7) // 8) * 8)
    if C_pad != C:
        padc = C_pad - C
        xr3 = jnp.pad(xr3, ((0, 0), (0, padc), (0, 0)))
        xi3 = jnp.pad(xi3, ((0, 0), (0, padc), (0, 0)))
        params = jnp.pad(params, ((0, padc), (0, 0)))

    # Size the channel block: double-buffered (2 in + 2 out) blocks plus a
    # conservative allowance for f32 block-sized temporaries inside the body
    # must fit a v7x-safe budget.
    f32_per_chan = N * HW * 4
    io_per_chan = N * HW * itemsize
    est_per_chan = 8 * io_per_chan + 4 * f32_per_chan
    budget = 40 * 1024 * 1024
    max_cblk = max(8, budget // est_per_chan)

    # Prefer >= 2 channel blocks when C allows (2 TensorCores on v7x megacore).
    target = min(max_cblk, C_pad // 2 if C_pad >= 16 else C_pad)
    c_blk = 8
    for d in range(8, C_pad + 1, 8):
        if C_pad % d == 0 and d <= target:
            c_blk = d

    vmem_limit = int(min(48 * 1024 * 1024,
                         max(32 * 1024 * 1024, c_blk * est_per_chan + (4 << 20))))

    grid = (C_pad // c_blk,)
    x_spec = pl.BlockSpec((N, c_blk, HW), lambda c: (0, c, 0))
    p_spec = pl.BlockSpec((c_blk, 8), lambda c: (c, 0))

    yr3, yi3 = pl.pallas_call(
        _cbn_kernel,
        out_shape=(jax.ShapeDtypeStruct((N, C_pad, HW), dtype),
                   jax.ShapeDtypeStruct((N, C_pad, HW), dtype)),
        grid=grid,
        in_specs=[x_spec, x_spec, p_spec],
        out_specs=(pl.BlockSpec((N, c_blk, HW), lambda c: (0, c, 0)),
                   pl.BlockSpec((N, c_blk, HW), lambda c: (0, c, 0))),
        compiler_params=pltpu.CompilerParams(
            dimension_semantics=("parallel",),
            vmem_limit_bytes=vmem_limit),
    )(xr3, xi3, params)

    if C_pad != C:
        yr3 = yr3[:, :C, :]
        yi3 = yi3[:, :C, :]
    return yr3.reshape(N, C, H, W), yi3.reshape(N, C, H, W)


def _reference(xr, xi, Wrr, Wri, Wii, Br, Bi):
    # Pure-JAX reference mirroring the PyTorch forward (training mode).
    red = (0, 2, 3)
    vdim = (1, -1, 1, 1)
    Mr = jnp.mean(xr, axis=red, keepdims=True)
    Mi = jnp.mean(xi, axis=red, keepdims=True)
    xr, xi = xr - Mr, xi - Mi
    Vrr = jnp.mean(xr * xr, axis=red, keepdims=True) + EPS
    Vri = jnp.mean(xr * xi, axis=red, keepdims=True)
    Vii = jnp.mean(xi * xi, axis=red, keepdims=True) + EPS
    tau = Vrr + Vii
    delta = Vrr * Vii - Vri ** 2
    s = jnp.sqrt(delta)
    t = jnp.sqrt(tau + 2 * s)
    rst = 1.0 / (s * t)
    Urr = (s + Vii) * rst
    Uii = (s + Vrr) * rst
    Uri = -Vri * rst
    Wrr_, Wri_, Wii_ = (w.reshape(vdim) for w in (Wrr, Wri, Wii))
    Zrr = Wrr_ * Urr + Wri_ * Uri
    Zri = Wrr_ * Uri + Wri_ * Uii
    Zir = Wri_ * Urr + Wii_ * Uri
    Zii = Wri_ * Uri + Wii_ * Uii
    yr = Zrr * xr + Zri * xi + Br.reshape(vdim)
    yi = Zir * xr + Zii * xi + Bi.reshape(vdim)
    return yr, yi


if __name__ == "__main__":
    key = jax.random.PRNGKey(0)
    k_xr, k_xi, k_wri = jax.random.split(key, 3)

    N, C, H, W = 2, 4, 16, 16
    xr = jax.random.normal(k_xr, (N, C, H, W), dtype=jnp.float32)
    xi = jax.random.normal(k_xi, (N, C, H, W), dtype=jnp.float32)

    # Deterministic parameter init matching reset_parameters():
    # Wrr = Wii = 1, Wri ~ U(-0.9, 0.9), Br = Bi = 0.
    Wrr = jnp.ones((C,), jnp.float32)
    Wii = jnp.ones((C,), jnp.float32)
    Wri = jax.random.uniform(k_wri, (C,), jnp.float32, minval=-0.9, maxval=0.9)
    Br = jnp.zeros((C,), jnp.float32)
    Bi = jnp.zeros((C,), jnp.float32)

    yr, yi = complex_batch_norm(xr, xi, Wrr, Wri, Wii, Br, Bi)
    yr = jax.block_until_ready(yr)
    yi = jax.block_until_ready(yi)

    yr_ref, yi_ref = _reference(xr, xi, Wrr, Wri, Wii, Br, Bi)
    assert jnp.allclose(yr, yr_ref, rtol=1e-4, atol=1e-4)
    assert jnp.allclose(yi, yi_ref, rtol=1e-4, atol=1e-4)

    print("KERNEL_OK")
</pallas_src>

<mosaic_0001>
module attributes {stable_mosaic.version = 11 : i64} {
  func.func @_cbn_kernel(%arg0: i32, %arg1: memref<2x8x256xf32, #tpu.memory_space<vmem>>, %arg2: memref<2x8x256xf32, #tpu.memory_space<vmem>>, %arg3: memref<8x8xf32, #tpu.memory_space<vmem>>, %arg4: memref<2x8x256xf32, #tpu.memory_space<vmem>>, %arg5: memref<2x8x256xf32, #tpu.memory_space<vmem>>) attributes {dimension_semantics = [#tpu.dimension_semantics<parallel>], iteration_bounds = array<i64: 1>, scalar_prefetch = 0 : i64, scratch_operands = 0 : i64, tpu.core_type = #tpu.core_type<tc>, window_params = [{transform_indices = @transform_0, window_bounds = array<i64: 2, 8, 256>}, {transform_indices = @transform_1, window_bounds = array<i64: 2, 8, 256>}, {transform_indices = @transform_2, window_bounds = array<i64: 8, 8>}, {transform_indices = @transform_3, window_bounds = array<i64: 2, 8, 256>}, {transform_indices = @transform_4, window_bounds = array<i64: 2, 8, 256>}]} {
    %c0 = arith.constant 0 : index
    %c0_0 = arith.constant 0 : index
    %c0_1 = arith.constant 0 : index
    %0 = vector.load %arg1[%c0, %c0_0, %c0_1] : memref<2x8x256xf32, #tpu.memory_space<vmem>>, vector<2x8x256xf32>
    %c0_2 = arith.constant 0 : index
    %c0_3 = arith.constant 0 : index
    %c0_4 = arith.constant 0 : index
    %1 = vector.load %arg2[%c0_2, %c0_3, %c0_4] : memref<2x8x256xf32, #tpu.memory_space<vmem>>, vector<2x8x256xf32>
    %cst = arith.constant dense<0.000000e+00> : vector<2x8xf32>
    %2 = vector.multi_reduction <add>, %0, %cst [2] : vector<2x8x256xf32> to vector<2x8xf32>
    %3 = vector.shape_cast %2 : vector<2x8xf32> to vector<2x8x1xf32>
    %cst_5 = arith.constant dense<0.000000e+00> : vector<8x1xf32>
    %4 = vector.multi_reduction <add>, %3, %cst_5 [0] : vector<2x8x1xf32> to vector<8x1xf32>
    %5 = vector.shape_cast %4 : vector<8x1xf32> to vector<1x8x1xf32>
    %cst_6 = arith.constant dense<0.000000e+00> : vector<2x8xf32>
    %6 = vector.multi_reduction <add>, %1, %cst_6 [2] : vector<2x8x256xf32> to vector<2x8xf32>
    %7 = vector.shape_cast %6 : vector<2x8xf32> to vector<2x8x1xf32>
    %cst_7 = arith.constant dense<0.000000e+00> : vector<8x1xf32>
    %8 = vector.multi_reduction <add>, %7, %cst_7 [0] : vector<2x8x1xf32> to vector<8x1xf32>
    %9 = vector.shape_cast %8 : vector<8x1xf32> to vector<1x8x1xf32>
    %10 = arith.mulf %0, %0 : vector<2x8x256xf32>
    %cst_8 = arith.constant dense<0.000000e+00> : vector<2x8xf32>
    %11 = vector.multi_reduction <add>, %10, %cst_8 [2] : vector<2x8x256xf32> to vector<2x8xf32>
    %12 = vector.shape_cast %11 : vector<2x8xf32> to vector<2x8x1xf32>
    %cst_9 = arith.constant dense<0.000000e+00> : vector<8x1xf32>
    %13 = vector.multi_reduction <add>, %12, %cst_9 [0] : vector<2x8x1xf32> to vector<8x1xf32>
    %14 = vector.shape_cast %13 : vector<8x1xf32> to vector<1x8x1xf32>
    %15 = arith.mulf %0, %1 : vector<2x8x256xf32>
    %cst_10 = arith.constant dense<0.000000e+00> : vector<2x8xf32>
    %16 = vector.multi_reduction <add>, %15, %cst_10 [2] : vector<2x8x256xf32> to vector<2x8xf32>
    %17 = vector.shape_cast %16 : vector<2x8xf32> to vector<2x8x1xf32>
    %cst_11 = arith.constant dense<0.000000e+00> : vector<8x1xf32>
    %18 = vector.multi_reduction <add>, %17, %cst_11 [0] : vector<2x8x1xf32> to vector<8x1xf32>
    %19 = vector.shape_cast %18 : vector<8x1xf32> to vector<1x8x1xf32>
    %20 = arith.mulf %1, %1 : vector<2x8x256xf32>
    %cst_12 = arith.constant dense<0.000000e+00> : vector<2x8xf32>
    %21 = vector.multi_reduction <add>, %20, %cst_12 [2] : vector<2x8x256xf32> to vector<2x8xf32>
    %22 = vector.shape_cast %21 : vector<2x8xf32> to vector<2x8x1xf32>
    %cst_13 = arith.constant dense<0.000000e+00> : vector<8x1xf32>
    %23 = vector.multi_reduction <add>, %22, %cst_13 [0] : vector<2x8x1xf32> to vector<8x1xf32>
    %24 = vector.shape_cast %23 : vector<8x1xf32> to vector<1x8x1xf32>
    %cst_14 = arith.constant 0.001953125 : f32
    %25 = vector.broadcast %cst_14 : f32 to vector<1x8x1xf32>
    %26 = arith.mulf %5, %25 : vector<1x8x1xf32>
    %cst_15 = arith.constant 0.001953125 : f32
    %27 = vector.broadcast %cst_15 : f32 to vector<1x8x1xf32>
    %28 = arith.mulf %9, %27 : vector<1x8x1xf32>
    %cst_16 = arith.constant 0.001953125 : f32
    %29 = vector.broadcast %cst_16 : f32 to vector<1x8x1xf32>
    %30 = arith.mulf %14, %29 : vector<1x8x1xf32>
    %31 = arith.mulf %26, %26 : vector<1x8x1xf32>
    %32 = arith.subf %30, %31 : vector<1x8x1xf32>
    %cst_17 = arith.constant 0.000000e+00 : f32
    %33 = vector.broadcast %cst_17 : f32 to vector<1x8x1xf32>
    %34 = arith.maximumf %32, %33 : vector<1x8x1xf32>
    %cst_18 = arith.constant 9.99999974E-6 : f32
    %35 = vector.broadcast %cst_18 : f32 to vector<1x8x1xf32>
    %36 = arith.addf %34, %35 : vector<1x8x1xf32>
    %cst_19 = arith.constant 0.001953125 : f32
    %37 = vector.broadcast %cst_19 : f32 to vector<1x8x1xf32>
    %38 = arith.mulf %19, %37 : vector<1x8x1xf32>
    %39 = arith.mulf %26, %28 : vector<1x8x1xf32>
    %40 = arith.subf %38, %39 : vector<1x8x1xf32>
    %cst_20 = arith.constant 0.001953125 : f32
    %41 = vector.broadcast %cst_20 : f32 to vector<1x8x1xf32>
    %42 = arith.mulf %24, %41 : vector<1x8x1xf32>
    %43 = arith.mulf %28, %28 : vector<1x8x1xf32>
    %44 = arith.subf %42, %43 : vector<1x8x1xf32>
    %cst_21 = arith.constant 0.000000e+00 : f32
    %45 = vector.broadcast %cst_21 : f32 to vector<1x8x1xf32>
    %46 = arith.maximumf %44, %45 : vector<1x8x1xf32>
    %cst_22 = arith.constant 9.99999974E-6 : f32
    %47 = vector.broadcast %cst_22 : f32 to vector<1x8x1xf32>
    %48 = arith.addf %46, %47 : vector<1x8x1xf32>
    %49 = arith.addf %36, %48 : vector<1x8x1xf32>
    %50 = arith.mulf %36, %48 : vector<1x8x1xf32>
    %51 = arith.mulf %40, %40 : vector<1x8x1xf32>
    %52 = arith.subf %50, %51 : vector<1x8x1xf32>
    %53 = math.sqrt %52 : vector<1x8x1xf32>
    %cst_23 = arith.constant 2.000000e+00 : f32
    %54 = vector.broadcast %cst_23 : f32 to vector<1x8x1xf32>
    %55 = arith.mulf %54, %53 : vector<1x8x1xf32>
    %56 = arith.addf %49, %55 : vector<1x8x1xf32>
    %57 = math.sqrt %56 : vector<1x8x1xf32>
    %58 = arith.mulf %53, %57 : vector<1x8x1xf32>
    %59 = tpu.reciprocal %58 : vector<1x8x1xf32> -> vector<1x8x1xf32>
    %60 = arith.addf %53, %48 : vector<1x8x1xf32>
    %61 = arith.mulf %60, %59 : vector<1x8x1xf32>
    %62 = arith.addf %53, %36 : vector<1x8x1xf32>
    %63 = arith.mulf %62, %59 : vector<1x8x1xf32>
    %cst_24 = arith.constant 0.000000e+00 : f32
    %64 = vector.broadcast %cst_24 : f32 to vector<1x8x1xf32>
    %65 = arith.subf %64, %40 : vector<1x8x1xf32>
    %66 = arith.mulf %65, %59 : vector<1x8x1xf32>
    %c0_25 = arith.constant 0 : index
    %c0_26 = arith.constant 0 : index
    %67 = vector.load %arg3[%c0_25, %c0_26] : memref<8x8xf32, #tpu.memory_space<vmem>>, vector<8x8xf32>
    %68 = vector.extract_strided_slice %67 {offsets = [0, 0], sizes = [8, 1], strides = [1, 1]} : vector<8x8xf32> to vector<8x1xf32>
    %69 = vector.shape_cast %68 : vector<8x1xf32> to vector<1x8x1xf32>
    %70 = vector.extract_strided_slice %67 {offsets = [0, 1], sizes = [8, 1], strides = [1, 1]} : vector<8x8xf32> to vector<8x1xf32>
    %71 = vector.shape_cast %70 : vector<8x1xf32> to vector<1x8x1xf32>
    %72 = vector.extract_strided_slice %67 {offsets = [0, 2], sizes = [8, 1], strides = [1, 1]} : vector<8x8xf32> to vector<8x1xf32>
    %73 = vector.shape_cast %72 : vector<8x1xf32> to vector<1x8x1xf32>
    %74 = vector.extract_strided_slice %67 {offsets = [0, 3], sizes = [8, 1], strides = [1, 1]} : vector<8x8xf32> to vector<8x1xf32>
    %75 = vector.shape_cast %74 : vector<8x1xf32> to vector<1x8x1xf32>
    %76 = vector.extract_strided_slice %67 {offsets = [0, 4], sizes = [8, 1], strides = [1, 1]} : vector<8x8xf32> to vector<8x1xf32>
    %77 = vector.shape_cast %76 : vector<8x1xf32> to vector<1x8x1xf32>
    %78 = arith.mulf %69, %61 : vector<1x8x1xf32>
    %79 = arith.mulf %71, %66 : vector<1x8x1xf32>
    %80 = arith.addf %78, %79 : vector<1x8x1xf32>
    %81 = arith.mulf %69, %66 : vector<1x8x1xf32>
    %82 = arith.mulf %71, %63 : vector<1x8x1xf32>
    %83 = arith.addf %81, %82 : vector<1x8x1xf32>
    %84 = arith.mulf %71, %61 : vector<1x8x1xf32>
    %85 = arith.mulf %73, %66 : vector<1x8x1xf32>
    %86 = arith.addf %84, %85 : vector<1x8x1xf32>
    %87 = arith.mulf %71, %66 : vector<1x8x1xf32>
    %88 = arith.mulf %73, %63 : vector<1x8x1xf32>
    %89 = arith.addf %87, %88 : vector<1x8x1xf32>
    %90 = arith.mulf %80, %26 : vector<1x8x1xf32>
    %91 = arith.mulf %83, %28 : vector<1x8x1xf32>
    %92 = arith.addf %90, %91 : vector<1x8x1xf32>
    %93 = arith.subf %75, %92 : vector<1x8x1xf32>
    %94 = arith.mulf %86, %26 : vector<1x8x1xf32>
    %95 = arith.mulf %89, %28 : vector<1x8x1xf32>
    %96 = arith.addf %94, %95 : vector<1x8x1xf32>
    %97 = arith.subf %77, %96 : vector<1x8x1xf32>
    %98 = vector.broadcast %80 : vector<1x8x1xf32> to vector<2x8x256xf32>
    %99 = arith.mulf %98, %0 : vector<2x8x256xf32>
    %100 = vector.broadcast %83 : vector<1x8x1xf32> to vector<2x8x256xf32>
    %101 = arith.mulf %100, %1 : vector<2x8x256xf32>
    %102 = arith.addf %99, %101 : vector<2x8x256xf32>
    %103 = vector.broadcast %93 : vector<1x8x1xf32> to vector<2x8x256xf32>
    %104 = arith.addf %102, %103 : vector<2x8x256xf32>
    %c0_27 = arith.constant 0 : index
    %c0_28 = arith.constant 0 : index
    %c0_29 = arith.constant 0 : index
    %105 = vector.load %arg4[%c0_27, %c0_28, %c0_29] : memref<2x8x256xf32, #tpu.memory_space<vmem>>, vector<2x8x256xf32>
    tpu.vector_store %arg4[%c0_27, %c0_28, %c0_29], %104 {strides = array<i32>} : memref<2x8x256xf32, #tpu.memory_space<vmem>>, vector<2x8x256xf32>,
    %106 = vector.broadcast %86 : vector<1x8x1xf32> to vector<2x8x256xf32>
    %107 = arith.mulf %106, %0 : vector<2x8x256xf32>
    %108 = vector.broadcast %89 : vector<1x8x1xf32> to vector<2x8x256xf32>
    %109 = arith.mulf %108, %1 : vector<2x8x256xf32>
    %110 = arith.addf %107, %109 : vector<2x8x256xf32>
    %111 = vector.broadcast %97 : vector<1x8x1xf32> to vector<2x8x256xf32>
    %112 = arith.addf %110, %111 : vector<2x8x256xf32>
    %c0_30 = arith.constant 0 : index
    %c0_31 = arith.constant 0 : index
    %c0_32 = arith.constant 0 : index
    %113 = vector.load %arg5[%c0_30, %c0_31, %c0_32] : memref<2x8x256xf32, #tpu.memory_space<vmem>>, vector<2x8x256xf32>
    tpu.vector_store %arg5[%c0_30, %c0_31, %c0_32], %112 {strides = array<i32>} : memref<2x8x256xf32, #tpu.memory_space<vmem>>, vector<2x8x256xf32>,
    return
  }
  func.func @transform_0(%arg0: i32) -> (i32, i32, i32) {
    %c0_i32 = arith.constant 0 : i32
    %c0_i32_0 = arith.constant 0 : i32
    %c0_i32_1 = arith.constant 0 : i32
    return %c0_i32, %arg0, %c0_i32_0 : i32, i32, i32
  }
  func.func @transform_1(%arg0: i32) -> (i32, i32, i32) {
    %c0_i32 = arith.constant 0 : i32
    %c0_i32_0 = arith.constant 0 : i32
    %c0_i32_1 = arith.constant 0 : i32
    return %c0_i32, %arg0, %c0_i32_0 : i32, i32, i32
  }
  func.func @transform_2(%arg0: i32) -> (i32, i32) {
    %c0_i32 = arith.constant 0 : i32
    %c0_i32_0 = arith.constant 0 : i32
    return %arg0, %c0_i32 : i32, i32
  }
  func.func @transform_3(%arg0: i32) -> (i32, i32, i32) {
    %c0_i32 = arith.constant 0 : i32
    %c0_i32_0 = arith.constant 0 : i32
    %c0_i32_1 = arith.constant 0 : i32
    return %c0_i32, %arg0, %c0_i32_0 : i32, i32, i32
  }
  func.func @transform_4(%arg0: i32) -> (i32, i32, i32) {
    %c0_i32 = arith.constant 0 : i32
    %c0_i32_0 = arith.constant 0 : i32
    %c0_i32_1 = arith.constant 0 : i32
    return %c0_i32, %arg0, %c0_i32_0 : i32, i32, i32
  }
}

</mosaic_0001>

<llo_original>
// kernel: tpu_custom_call.1
$region0: #{tpu_custom_call.1}
  #allocation0 [shape = 'u32[]', space=smem, size = 0x4, offset = 0x4, fixed_abs, tag = 'smem constant byte address 0x4 - core index']
  #allocation1 [shape = 'u32[72,128]{1,0:T(1,128)}', space=vmem, size = 0x9000, scoped, tag = 'internal scratch']
  %s0 = inlined_call_operand.hbm [shape: f32[2,8,256], index: 0, kind: input, shape index: {}]
  %s1 = inlined_call_operand.hbm [shape: f32[2,8,256], index: 1, kind: input, shape index: {}]
  %s2 = inlined_call_operand.hbm [shape: f32[8,8], index: 2, kind: input, shape index: {}]
  %s3 = inlined_call_operand.hbm [shape: f32[2,8,256], index: 3, kind: output, shape index: {0}]
  %s4 = inlined_call_operand.hbm [shape: f32[2,8,256], index: 4, kind: output, shape index: {1}]
  %5 = xla_tuple %s3, %s4
  %s6 = sld [smem:[#allocation0]]
  $region42: #{tpu_custom_call.1} parent=0
    _
  %s8 = ssub.s32 1, %s6
  %s9 = scalar_select 0, %s8, %s6
  $region1: #{tpu_custom_call.1} parent=0
    #allocation2 [shape = 'u8[16384]{0}', space=vmem, size = 0x4000, scoped, tag = 'input window, operand 0, single buffered']
    #allocation3 [shape = 's32[1]{0}', space=sflag, size = 0x4, scoped, tag = 'scoped memory for tpu_custom_call.1']
    #allocation4 [shape = 's32[1]{0}', space=sflag, size = 0x4, scoped, tag = 'scoped memory for tpu_custom_call.1']
    #allocation5 [shape = 'u8[16384]{0}', space=vmem, size = 0x4000, scoped, tag = 'input window, operand 1, single buffered']
    #allocation6 [shape = 's32[1]{0}', space=sflag, size = 0x4, scoped, tag = 'scoped memory for tpu_custom_call.1']
    #allocation7 [shape = 'u8[4096]{0}', space=vmem, size = 0x1000, scoped, tag = 'input window, operand 2, single buffered']
    #allocation8 [shape = 'u8[16384]{0}', space=vmem, size = 0x4000, scoped, tag = 'output window, operand 0, single buffered']
    #allocation9 [shape = 'u8[16384]{0}', space=vmem, size = 0x4000, scoped, tag = 'output window, operand 1, single buffered']
    #allocation10 [shape = 's32[1]{0}', space=sflag, size = 0x4, scoped, tag = 'scoped memory for tpu_custom_call.1']
    %10 = vsyncpa [#allocation3], 0
    %11 = vsyncpa [#allocation6], 0
    %12 = vsyncpa [#allocation4], 0
    %13 = vsyncpa [#allocation10], 0
    // Predicated region
    $region2: #{tpu_custom_call.1} parent=1 // pred_check
      _
    $region3: #{tpu_custom_call.1} parent=1 // pred_check_branch
      %15 = sbr.rel (0) target = $region5
    $region4: #{tpu_custom_call.1} parent=1 // pred_region
      %17 = vsyncadd [#allocation3], 0
      %s18 = sshll.u32 %s0, 4
      %s19 = int_to_ptr.hbm [resolvable:$true] %s18
      %s20 = sshll.u32 [#allocation2], 4
      %s21 = int_to_ptr.vmem [resolvable:$true] %s20
      %26 = dma.hbm_to_vmem [thread:$0]  %s19, 512, %s21, [#allocation3], 256, 256, 16
    $region5: #{tpu_custom_call.1} parent=1 // pred_fallthru
      _
    // Predicated region
    $region6: #{tpu_custom_call.1} parent=1 // pred_check
      _
    $region7: #{tpu_custom_call.1} parent=1 // pred_check_branch
      %28 = sbr.rel (0) target = $region9
    $region8: #{tpu_custom_call.1} parent=1 // pred_region
      %30 = vsyncadd [#allocation6], 0
      %s31 = sshll.u32 %s1, 4
      %s32 = int_to_ptr.hbm [resolvable:$true] %s31
      %s33 = sshll.u32 [#allocation5], 4
      %s34 = int_to_ptr.vmem [resolvable:$true] %s33
      %39 = dma.hbm_to_vmem [thread:$0]  %s32, 512, %s34, [#allocation6], 256, 256, 16
    $region9: #{tpu_custom_call.1} parent=1 // pred_fallthru
      _
    // Predicated region
    $region10: #{tpu_custom_call.1} parent=1 // pred_check
      _
    $region11: #{tpu_custom_call.1} parent=1 // pred_check_branch
      %41 = sbr.rel (0) target = $region13
    $region12: #{tpu_custom_call.1} parent=1 // pred_region
      %43 = vsyncadd [#allocation6], 0
      %s45 = sshll.u32 %s2, 4
      %s46 = int_to_ptr.hbm [resolvable:$true] %s45
      %s47 = sshll.u32 [#allocation7], 4
      %s48 = int_to_ptr.vmem [resolvable:$true] %s47
      %50 = dma.hbm_to_vmem [thread:$0]  %s46, 128, %s48, [#allocation6]
    $region13: #{tpu_custom_call.1} parent=1 // pred_fallthru
      _
    // Predicated region
    $region14: #{tpu_custom_call.1} parent=1 // pred_check
      _
    $region15: #{tpu_custom_call.1} parent=1 // pred_check_branch
      %52 = sbr.rel (0) target = $region17
    $region16: #{tpu_custom_call.1} parent=1 // pred_region
      %54 = dma.done [#allocation3], 512
    $region17: #{tpu_custom_call.1} parent=1 // pred_fallthru
      _
    // Predicated region
    $region18: #{tpu_custom_call.1} parent=1 // pred_check
      _
    $region19: #{tpu_custom_call.1} parent=1 // pred_check_branch
      %56 = sbr.rel (0) target = $region21
    $region20: #{tpu_custom_call.1} parent=1 // pred_region
      %58 = dma.done [#allocation6], 512
    $region21: #{tpu_custom_call.1} parent=1 // pred_fallthru
      _
    // Predicated region
    $region22: #{tpu_custom_call.1} parent=1 // pred_check
      _
    $region23: #{tpu_custom_call.1} parent=1 // pred_check_branch
      %60 = sbr.rel (0) target = $region25
    $region24: #{tpu_custom_call.1} parent=1 // pred_region
      %62 = dma.done [#allocation6], 128
    $region25: #{tpu_custom_call.1} parent=1 // pred_fallthru
      _
    %v63 = vld [vmem:[#allocation2] sm:$0xff]
    %v64 = vld [vmem:[#allocation2 + $0x8] sm:$0xff]
    %v65 = vld [vmem:[#allocation2 + $0x10] sm:$0xff]
    %v66 = vld [vmem:[#allocation2 + $0x18] sm:$0xff]
    %v67 = vld [vmem:[#allocation5] sm:$0xff]
    %v68 = vld [vmem:[#allocation5 + $0x8] sm:$0xff]
    %v69 = vld [vmem:[#allocation5 + $0x10] sm:$0xff]
    %v70 = vld [vmem:[#allocation5 + $0x18] sm:$0xff]
    %v71 = vadd.f32 %v63, %v64
    %72 = vadd.xlane.f32.xlu0 %v71
    %v73 = vpop.xlane.xlu0 %72
    %v74 = vadd.f32 %v65, %v66
    %75 = vadd.xlane.f32.xlu0 %v74
    %v76 = vpop.xlane.xlu0 %75
    %v77 = vadd.f32 %v73, %v76
    %v78 = vadd.f32 %v67, %v68
    %79 = vadd.xlane.f32.xlu0 %v78
    %v80 = vpop.xlane.xlu0 %79
    %v81 = vadd.f32 %v69, %v70
    %82 = vadd.xlane.f32.xlu0 %v81
    %v83 = vpop.xlane.xlu0 %82
    %v84 = vadd.f32 %v80, %v83
    %v85 = vmul.f32 %v63, %v63
    %v86 = vmul.f32 %v64, %v64
    %v87 = vmul.f32 %v65, %v65
    %v88 = vmul.f32 %v66, %v66
    %v89 = vadd.f32 %v85, %v86
    %90 = vadd.xlane.f32.xlu0 %v89
    %v91 = vpop.xlane.xlu0 %90
    %v92 = vadd.f32 %v87, %v88
    %93 = vadd.xlane.f32.xlu0 %v92
    %v94 = vpop.xlane.xlu0 %93
    %v95 = vadd.f32 %v91, %v94
    %v96 = vmul.f32 %v63, %v67
    %v97 = vmul.f32 %v64, %v68
    %v98 = vmul.f32 %v65, %v69
    %v99 = vmul.f32 %v66, %v70
    %v100 = vadd.f32 %v96, %v97
    %101 = vadd.xlane.f32.xlu0 %v100
    %v102 = vpop.xlane.xlu0 %101
    %v103 = vadd.f32 %v98, %v99
    %104 = vadd.xlane.f32.xlu0 %v103
    %v105 = vpop.xlane.xlu0 %104
    %v106 = vadd.f32 %v102, %v105
    %v107 = vmul.f32 %v67, %v67
    %v108 = vmul.f32 %v68, %v68
    %v109 = vmul.f32 %v69, %v69
    %v110 = vmul.f32 %v70, %v70
    %v111 = vadd.f32 %v107, %v108
    %112 = vadd.xlane.f32.xlu0 %v111
    %v113 = vpop.xlane.xlu0 %112
    %v114 = vadd.f32 %v109, %v110
    %115 = vadd.xlane.f32.xlu0 %v114
    %v116 = vpop.xlane.xlu0 %115
    %v117 = vadd.f32 %v113, %v116
    %v118 = vmul.f32 %v77, 0.001953125
    %v119 = vmul.f32 %v84, 0.001953125
    %v120 = vmul.f32 %v95, 0.001953125
    %v121 = vmul.f32 %v118, %v118
    %v122 = vsub.f32 %v120, %v121
    %v123 = vmax.f32 %v122, 0.0
    %v124 = vadd.f32 %v123, 1e-05
    %v125 = vmul.f32 %v106, 0.001953125
    %v126 = vmul.f32 %v118, %v119
    %v127 = vsub.f32 %v125, %v126
    %v128 = vmul.f32 %v117, 0.001953125
    %v129 = vmul.f32 %v119, %v119
    %v130 = vsub.f32 %v128, %v129
    %v131 = vmax.f32 %v130, 0.0
    %v132 = vadd.f32 %v131, 1e-05
    %v133 = vadd.f32 %v124, %v132
    %v134 = vmul.f32 %v124, %v132
    %v135 = vmul.f32 %v127, %v127
    %v136 = vsub.f32 %v134, %v135
    %v137 = vrsqrt.pop %v136
    %v138 = vmul.f32 %v137, %v136
    %v139 = vmul.f32 %v138, %v137
    %v140 = vmul.f32 0.5, %v139
    %v141 = vsub.f32 1.5, %v140
    %v142 = vmul.f32 %v137, %v141
    %v143 = vmul.f32 %v136, %v142
    %vm144 = vcmp.eq.f32.partialorder %v136, inf
    %v145 = vsel %vm144, %v136, %v143
    %vm146 = vcmp.eq.f32.partialorder %v136, 0.0
    %v147 = vand.u32 %v136, 2147483648
    %v148 = vsel %vm146, %v147, %v145
    %v149 = vmul.f32 %v148, 2.0
    %v150 = vadd.f32 %v133, %v149
    %v151 = vrsqrt.pop %v150
    %v152 = vmul.f32 %v151, %v150
    %v153 = vmul.f32 %v152, %v151
    %v154 = vmul.f32 0.5, %v153
    %v155 = vsub.f32 1.5, %v154
    %v156 = vmul.f32 %v151, %v155
    %v157 = vmul.f32 %v150, %v156
    %vm158 = vcmp.eq.f32.partialorder %v150, inf
    %v159 = vsel %vm158, %v150, %v157
    %vm160 = vcmp.eq.f32.partialorder %v150, 0.0
    %v161 = vand.u32 %v150, 2147483648
    %v162 = vsel %vm160, %v161, %v159
    %v163 = vmul.f32 %v148, %v162
    %v164 = vrcp.pop %v163
    %v165 = vmul.f32 %v163, %v164
    %v166 = vsub.f32 1.0, %v165
    %v167 = vmul.f32 %v164, %v166
    %v168 = vadd.f32 %v164, %v167
    %vm169 = vweird.f32 %v163
    %vm170 = vweird.f32 %v164
    %vm171 = vmor %vm169, %vm170
    %v172 = vsel %vm171, %v164, %v168
    %v173 = vand.u32 2147483647, %v163
    %vm174 = vcmp.eq.f32.partialorder %v173, 8.507059e+37
    %v175 = vand.u32 %v163, 2147483648
    %v176 = vor.u32 1.1754944e-38, %v175
    %v177 = vsel %vm174, %v176, %v172
    %v178 = vadd.f32 %v148, %v132
    %v179 = vmul.f32 %v178, %v177
    %v180 = vadd.f32 %v148, %v124
    %v181 = vmul.f32 %v180, %v177
    %v182 = vsub.f32 0.0, %v127
    %v183 = vmul.f32 %v182, %v177
    %v184 = vld [vmem:[#allocation7] sm:$0xff]
    %v185 = vmul.f32 %v184, %v179
    %v186 = vmul.f32 %v184, %v183
    %188 = vrot.lane.b32.xlu0 %v186, 127
    %v189 = vpop.permute.xlu0 %188
    %v191 = vadd.f32 %v185, %v189
    %v192 = vmul.f32 %v184, %v181
    %194 = vrot.lane.b32.xlu0 %v192, 127
    %v195 = vpop.permute.xlu0 %194
    %v197 = vadd.f32 %v186, %v195
    %v198 = vmul.f32 %v191, %v118
    %v199 = vmul.f32 %v197, %v119
    %v200 = vadd.f32 %v198, %v199
    %202 = vrot.lane.b32.xlu0 %v200, 3
    %v203 = vpop.permute.xlu0 %202
    %v205 = vsub.f32 %v184, %v203
    %207 = vset.pattern.permute.xlu0 0
    %208 = vperm.xlu0 %207, %v191
    %v209 = vpop.permute.xlu0 %208
    %v211 = vmul.f32 %v209, %v63
    %v212 = vmul.f32 %v209, %v64
    %v213 = vmul.f32 %v209, %v65
    %v214 = vmul.f32 %v209, %v66
    %216 = vset.pattern.permute.xlu0 0
    %217 = vperm.xlu0 %216, %v197
    %v218 = vpop.permute.xlu0 %217
    %v220 = vmul.f32 %v218, %v67
    %v221 = vmul.f32 %v218, %v68
    %v222 = vmul.f32 %v218, %v69
    %v223 = vmul.f32 %v218, %v70
    %v224 = vadd.f32 %v211, %v220
    %v225 = vadd.f32 %v212, %v221
    %v226 = vadd.f32 %v213, %v222
    %v227 = vadd.f32 %v214, %v223
    %229 = vset.pattern.permute.xlu0 3
    %230 = vperm.xlu0 %229, %v205
    %v231 = vpop.permute.xlu0 %230
    %v233 = vadd.f32 %v224, %v231
    %v234 = vadd.f32 %v225, %v231
    %v235 = vadd.f32 %v226, %v231
    %v236 = vadd.f32 %v227, %v231
    %237 = vst [vmem:[#allocation8] sm:$0xff] %v233
    %238 = vst [vmem:[#allocation8 + $0x8] sm:$0xff] %v234
    %239 = vst [vmem:[#allocation8 + $0x10] sm:$0xff] %v235
    %240 = vst [vmem:[#allocation8 + $0x18] sm:$0xff] %v236
    %241 = vset.pattern.permute.xlu0 1
    %242 = vperm.xlu0 %241, %v191
    %v243 = vpop.permute.xlu0 %242
    %v245 = vmul.f32 %v243, %v63
    %v246 = vmul.f32 %v243, %v64
    %v247 = vmul.f32 %v243, %v65
    %v248 = vmul.f32 %v243, %v66
    %249 = vset.pattern.permute.xlu0 1
    %250 = vperm.xlu0 %249, %v197
    %v251 = vpop.permute.xlu0 %250
    %v253 = vmul.f32 %v251, %v67
    %v254 = vmul.f32 %v251, %v68
    %v255 = vmul.f32 %v251, %v69
    %v256 = vmul.f32 %v251, %v70
    %v257 = vadd.f32 %v245, %v253
    %v258 = vadd.f32 %v246, %v254
    %v259 = vadd.f32 %v247, %v255
    %v260 = vadd.f32 %v248, %v256
    %261 = vset.pattern.permute.xlu0 4
    %262 = vperm.xlu0 %261, %v205
    %v263 = vpop.permute.xlu0 %262
    %v265 = vadd.f32 %v257, %v263
    %v266 = vadd.f32 %v258, %v263
    %v267 = vadd.f32 %v259, %v263
    %v268 = vadd.f32 %v260, %v263
    %269 = vst [vmem:[#allocation9] sm:$0xff] %v265
    %270 = vst [vmem:[#allocation9 + $0x8] sm:$0xff] %v266
    %271 = vst [vmem:[#allocation9 + $0x10] sm:$0xff] %v267
    %272 = vst [vmem:[#allocation9 + $0x18] sm:$0xff] %v268
    // Predicated region
    $region26: #{tpu_custom_call.1} parent=1 // pred_check
      _
    $region27: #{tpu_custom_call.1} parent=1 // pred_check_branch
      %274 = sbr.rel (0) target = $region29
    $region28: #{tpu_custom_call.1} parent=1 // pred_region
      %276 = vsyncadd [#allocation4], 0
      %s277 = sshll.u32 [#allocation8], 4
      %s278 = int_to_ptr.vmem [resolvable:$true] %s277
      %s279 = sshll.u32 %s3, 4
      %s280 = int_to_ptr.hbm [resolvable:$true] %s279
      %285 = dma.vmem_to_hbm [thread:$0]  %s278, 512, %s280, [#allocation4], 256, 256, 16
    $region29: #{tpu_custom_call.1} parent=1 // pred_fallthru
      _
    // Predicated region
    $region30: #{tpu_custom_call.1} parent=1 // pred_check
      _
    $region31: #{tpu_custom_call.1} parent=1 // pred_check_branch
      %287 = sbr.rel (0) target = $region33
    $region32: #{tpu_custom_call.1} parent=1 // pred_region
      %289 = vsyncadd [#allocation10], 0
      %s290 = sshll.u32 [#allocation9], 4
      %s291 = int_to_ptr.vmem [resolvable:$true] %s290
      %s292 = sshll.u32 %s4, 4
      %s293 = int_to_ptr.hbm [resolvable:$true] %s292
      %298 = dma.vmem_to_hbm [thread:$0]  %s291, 512, %s293, [#allocation10], 256, 256, 16
    $region33: #{tpu_custom_call.1} parent=1 // pred_fallthru
      _
    // Predicated region
    $region34: #{tpu_custom_call.1} parent=1 // pred_check
      _
    $region35: #{tpu_custom_call.1} parent=1 // pred_check_branch
      %300 = sbr.rel (0) target = $region37
    $region36: #{tpu_custom_call.1} parent=1 // pred_region
      %302 = dma.done [#allocation4], 512
    $region37: #{tpu_custom_call.1} parent=1 // pred_fallthru
      _
    // Predicated region
    $region38: #{tpu_custom_call.1} parent=1 // pred_check
      _
    $region39: #{tpu_custom_call.1} parent=1 // pred_check_branch
      %304 = sbr.rel (0) target = $region41
    $region40: #{tpu_custom_call.1} parent=1 // pred_region
      %306 = dma.done [#allocation10], 512
    $region41: #{tpu_custom_call.1} parent=1 // pred_fallthru
      _
    %307 = vsyncpa [#allocation3], 1
    %308 = vsyncpa [#allocation6], 1
    %309 = vsyncpa [#allocation4], 1
    %310 = vsyncpa [#allocation10], 1

</llo_original>
